<compile_context>
chip_gen: v6e
topology: v6e:2x2x1
jax: 0.10.0
libtpu: 0.0.40
codegen_flags: <defaults>
</compile_context>

<pallas_src>
import functools

import jax
import jax.numpy as jnp
from jax.experimental import pallas as pl
from jax.experimental.pallas import tpu as pltpu


def _round_up(x, m):
    return (x + m - 1) // m * m


def _pred_head_kernel(x_ref, w1_ref, b1_ref, w2_ref, b2_ref, o_ref):
    # x_ref: (TB, D) f32, w1_ref: (D, HP) bf16, b1_ref/w2_ref: (1, HP) f32,
    # b2_ref: (1,) f32 in SMEM, o_ref: (TB, 1) f32.
    # Cast x to bf16 in VMEM (no extra HBM traffic) for the bf16 MXU path.
    x_bf = x_ref[...].astype(jnp.bfloat16)
    # Layer 1 on the MXU: bf16 x bf16 -> f32 accumulate, full 128-lane width.
    h = jnp.dot(x_bf, w1_ref[...], preferred_element_type=jnp.float32)
    h = jnp.maximum(h + b1_ref[...], 0.0)                      # (TB, HP) f32
    # Layer 2: an N=1 matmul wastes the MXU; do VPU multiply + XLU lane reduce.
    o = jnp.sum(h * w2_ref[...], axis=-1, keepdims=True) + b2_ref[0]
    o_ref[...] = o.astype(o_ref.dtype)


def _choose_batch_tile(B, batch_tile):
    # >= 2 grid steps whenever B > 128 (keeps both v7x TensorCores busy),
    # capped at `batch_tile` (~1 MiB of f32 x per DMA at D=32).
    tb = min(batch_tile, _round_up(max(-(-B // 2), 1), 128))
    return max(tb, 128)


@functools.partial(jax.jit, static_argnames=("batch_tile",))
def base_pred_model_forward(x, w1, b1, w2, b2, *, batch_tile=8192):
    """x: (B, D) f32.  w1: (D, H), b1: (1, H), w2: (H, 1), b2: (1, 1).

    Returns (B,) f32 — squeeze(dim=1) of the (B, 1) head output.
    """
    B, D = x.shape
    H = w1.shape[1]
    HP = _round_up(max(H, 128), 128)       # pad hidden dim to full lane width
    TB = _choose_batch_tile(B, batch_tile)
    grid = (pl.cdiv(B, TB),)               # partial last block allowed

    # Resident parameter tiles (tiny; padded once outside the kernel).
    w1_p = jnp.zeros((D, HP), jnp.bfloat16).at[:, :H].set(w1.astype(jnp.bfloat16))
    b1_p = jnp.zeros((1, HP), jnp.float32).at[:, :H].set(b1.astype(jnp.float32))
    # w2 as a lane-dense (1, HP) row so layer 2 is a VPU mul + lane reduce.
    w2_row = jnp.zeros((1, HP), jnp.float32).at[:, :H].set(
        w2.astype(jnp.float32).reshape(1, H))
    b2_s = b2.astype(jnp.float32).reshape((1,))            # SMEM scalar

    cost = pl.CostEstimate(
        flops=2 * B * D * HP + 2 * B * HP,
        transcendentals=0,
        bytes_accessed=(B * D * 4) + (D * HP * 2) + (2 * HP * 4) + 4 + (B * 4),
    )

    out = pl.pallas_call(
        _pred_head_kernel,
        out_shape=jax.ShapeDtypeStruct((B, 1), jnp.float32),
        grid=grid,
        in_specs=[
            pl.BlockSpec((TB, D), lambda i: (i, 0)),        # x tile, pipelined
            pl.BlockSpec((D, HP), lambda i: (0, 0)),        # w1 (resident)
            pl.BlockSpec((1, HP), lambda i: (0, 0)),        # b1 (resident)
            pl.BlockSpec((1, HP), lambda i: (0, 0)),        # w2 row (resident)
            pl.BlockSpec(memory_space=pltpu.MemorySpace.SMEM),  # b2 scalar
        ],
        out_specs=pl.BlockSpec((TB, 1), lambda i: (i, 0)),
        compiler_params=pltpu.CompilerParams(
            dimension_semantics=("parallel",),              # megacore on v7x
            vmem_limit_bytes=32 * 1024 * 1024,              # safe on v5e/v6e/v7x
        ),
        cost_estimate=cost,
    )(x, w1_p, b1_p, w2_row, b2_s)

    # torch.squeeze(..., dim=1): (B, 1) -> (B,)  (glue, outside the kernel)
    return out[:, 0]


if __name__ == "__main__":
    B, D, H = 256, 32, 32  # small shapes consistent with a (B, D) -> (B,) pred head

    key = jax.random.PRNGKey(0)
    kx, kw1, kb1, kw2, kb2 = jax.random.split(key, 5)

    x = jax.random.normal(kx, (B, D), dtype=jnp.float32)
    # Deterministic synthetic parameters (no checkpoint load).
    w1 = jax.random.normal(kw1, (D, H), dtype=jnp.float32) * 0.1
    b1 = jax.random.normal(kb1, (1, H), dtype=jnp.float32) * 0.01
    w2 = jax.random.normal(kw2, (H, 1), dtype=jnp.float32) * 0.1
    b2 = jax.random.normal(kb2, (1, 1), dtype=jnp.float32) * 0.01

    y = base_pred_model_forward(x, w1, b1, w2, b2)
    jax.block_until_ready(y)

    # Reference in plain JAX, matching the kernel's in-kernel bf16 cast of x/w1.
    # NOTE: bf16 layer-1 numerics differ from a pure-f32 torch head (~1e-2 rel).
    x_b = x.astype(jnp.bfloat16).astype(jnp.float32)
    w1_b = w1.astype(jnp.bfloat16).astype(jnp.float32)
    h_ref = jnp.maximum(x_b @ w1_b + b1, 0.0)
    ref = jnp.sum(h_ref * w2[:, 0][None, :], axis=-1) + b2[0, 0]

    assert y.shape == (B,)
    assert jnp.allclose(y, ref, atol=1e-4, rtol=1e-4), float(jnp.max(jnp.abs(y - ref)))

    print("KERNEL_OK")
</pallas_src>

<mosaic_0001>
module attributes {stable_mosaic.version = 11 : i64} {
  func.func @_pred_head_kernel(%arg0: i32, %arg1: memref<128x32xf32, #tpu.memory_space<vmem>>, %arg2: memref<32x128xbf16, #tpu.memory_space<vmem>>, %arg3: memref<1x128xf32, #tpu.memory_space<vmem>>, %arg4: memref<1x128xf32, #tpu.memory_space<vmem>>, %arg5: memref<1xf32, #tpu.memory_space<smem>>, %arg6: memref<128x1xf32, #tpu.memory_space<vmem>>) attributes {dimension_semantics = [#tpu.dimension_semantics<parallel>], iteration_bounds = array<i64: 2>, scalar_prefetch = 0 : i64, scratch_operands = 0 : i64, tpu.core_type = #tpu.core_type<tc>, window_params = [{transform_indices = @transform_0, window_bounds = array<i64: 128, 32>}, {pipeline_mode = #tpu.pipeline_mode<synchronous>, transform_indices = @transform_1, window_bounds = array<i64: 32, 128>}, {pipeline_mode = #tpu.pipeline_mode<synchronous>, transform_indices = @transform_2, window_bounds = array<i64: 1, 128>}, {pipeline_mode = #tpu.pipeline_mode<synchronous>, transform_indices = @transform_3, window_bounds = array<i64: 1, 128>}, {transform_indices = @transform_4, window_bounds = array<i64: 1>}, {transform_indices = @transform_5, window_bounds = array<i64: 128, 1>}]} {
    %c0 = arith.constant 0 : index
    %c0_0 = arith.constant 0 : index
    %0 = vector.load %arg1[%c0, %c0_0] : memref<128x32xf32, #tpu.memory_space<vmem>>, vector<128x32xf32>
    %1 = arith.truncf %0 : vector<128x32xf32> to vector<128x32xbf16>
    %c0_1 = arith.constant 0 : index
    %c0_2 = arith.constant 0 : index
    %2 = vector.load %arg2[%c0_1, %c0_2] : memref<32x128xbf16, #tpu.memory_space<vmem>>, vector<32x128xbf16>
    %cst = arith.constant dense<0.000000e+00> : vector<128x128xf32>
    %3 = tpu.matmul %1, %2, %cst {dimension_numbers = #tpu.dot_dimension_numbers<[1], [0], [0], [1], [0, 0, 1, 1], [], []>} : vector<128x32xbf16>, vector<32x128xbf16>, vector<128x128xf32> -> vector<128x128xf32>
    %c0_3 = arith.constant 0 : index
    %c0_4 = arith.constant 0 : index
    %4 = vector.load %arg3[%c0_3, %c0_4] : memref<1x128xf32, #tpu.memory_space<vmem>>, vector<1x128xf32>
    %5 = vector.broadcast %4 : vector<1x128xf32> to vector<128x128xf32>
    %6 = arith.addf %3, %5 : vector<128x128xf32>
    %cst_5 = arith.constant 0.000000e+00 : f32
    %7 = vector.broadcast %cst_5 : f32 to vector<128x128xf32>
    %8 = arith.maximumf %6, %7 : vector<128x128xf32>
    %c0_6 = arith.constant 0 : index
    %c0_7 = arith.constant 0 : index
    %9 = vector.load %arg4[%c0_6, %c0_7] : memref<1x128xf32, #tpu.memory_space<vmem>>, vector<1x128xf32>
    %10 = vector.broadcast %9 : vector<1x128xf32> to vector<128x128xf32>
    %11 = arith.mulf %8, %10 : vector<128x128xf32>
    %cst_8 = arith.constant dense<0.000000e+00> : vector<128xf32>
    %12 = vector.multi_reduction <add>, %11, %cst_8 [1] : vector<128x128xf32> to vector<128xf32>
    %13 = vector.shape_cast %12 : vector<128xf32> to vector<128x1xf32>
    %c0_9 = arith.constant 0 : index
    %14 = memref.load %arg5[%c0_9] : memref<1xf32, #tpu.memory_space<smem>>
    %15 = vector.broadcast %14 : f32 to vector<128x1xf32>
    %16 = arith.addf %13, %15 : vector<128x1xf32>
    %c0_10 = arith.constant 0 : index
    %c0_11 = arith.constant 0 : index
    %17 = vector.load %arg6[%c0_10, %c0_11] : memref<128x1xf32, #tpu.memory_space<vmem>>, vector<128x1xf32>
    tpu.vector_store %arg6[%c0_10, %c0_11], %16 {strides = array<i32>} : memref<128x1xf32, #tpu.memory_space<vmem>>, vector<128x1xf32>,
    return
  }
  func.func @transform_0(%arg0: i32) -> (i32, i32) {
    %c0_i32 = arith.constant 0 : i32
    %c0_i32_0 = arith.constant 0 : i32
    return %arg0, %c0_i32 : i32, i32
  }
  func.func @transform_1(%arg0: i32) -> (i32, i32) {
    %c0_i32 = arith.constant 0 : i32
    %c0_i32_0 = arith.constant 0 : i32
    %c0_i32_1 = arith.constant 0 : i32
    return %c0_i32, %c0_i32_0 : i32, i32
  }
  func.func @transform_2(%arg0: i32) -> (i32, i32) {
    %c0_i32 = arith.constant 0 : i32
    %c0_i32_0 = arith.constant 0 : i32
    %c0_i32_1 = arith.constant 0 : i32
    return %c0_i32, %c0_i32_0 : i32, i32
  }
  func.func @transform_3(%arg0: i32) -> (i32, i32) {
    %c0_i32 = arith.constant 0 : i32
    %c0_i32_0 = arith.constant 0 : i32
    %c0_i32_1 = arith.constant 0 : i32
    return %c0_i32, %c0_i32_0 : i32, i32
  }
  func.func @transform_4(%arg0: i32) -> i32 {
    %c0_i32 = arith.constant 0 : i32
    %c0_i32_0 = arith.constant 0 : i32
    return %c0_i32 : i32
  }
  func.func @transform_5(%arg0: i32) -> (i32, i32) {
    %c0_i32 = arith.constant 0 : i32
    %c0_i32_0 = arith.constant 0 : i32
    return %arg0, %c0_i32 : i32, i32
  }
}

</mosaic_0001>

<llo_original>
// kernel: base_pred_model_forward.1
$region0: #{base_pred_model_forward.1}
  #allocation0 [shape = 'u32[]', space=smem, size = 0x4, offset = 0x4, fixed_abs, tag = 'smem constant byte address 0x4 - core index']
  #allocation1 [shape = 'u32[144,128]{1,0:T(1,128)}', space=vmem, size = 0x12000, scoped, tag = 'internal scratch']
  #allocation2 [shape = 'f32[1]{0:T(128)S(6)}', space=smem, size = 0x200, scoped, tag = 'scoped memory for base_pred_model_forward.1']
  %s0 = inlined_call_operand.vmem [shape: f32[256,32], index: 0, kind: input, shape index: {}]
  %s1 = inlined_call_operand.vmem [shape: bf16[32,128], index: 1, kind: input, shape index: {}]
  %s2 = inlined_call_operand.vmem [shape: f32[1,128], index: 2, kind: input, shape index: {}]
  %s3 = inlined_call_operand.vmem [shape: f32[1,128], index: 3, kind: input, shape index: {}]
  %s4 = inlined_call_operand.<no memory space> [shape: f32[1], index: 4, kind: input, shape index: {}]
  %s5 = inlined_call_operand.vmem [shape: f32[256,1], index: 5, kind: output, shape index: {}]
  %s6 = sld [smem:[#allocation0]]
  $region53: #{base_pred_model_forward.1} parent=0
    _
  %s8 = ssub.s32 1, %s6
  %s9 = scalar_select 0, %s8, %s6
  %10 = sst [smem:[#allocation2]] %s4
  loop: start=0, step=1, limit=4
  $region2: #{base_pred_model_forward.1} parent=0 // loop_pre_header
    _
  $region3: #{base_pred_model_forward.1} parent=0 // loop_header
    %s12 = sphi 0, %s16
    %p13 = scmp.ge.s32.totalorder %s12, 4
    %s22 = sphi 0, %s24
    %s25 = sphi 0, %s22
    %s26 = sphi 0, %s25
    %s42 = sphi 0, %s26
    %s46 = sphi 0, %s46
    %s48 = sphi 0, %s46
    %s49 = sphi 0, %s48
    %s63 = sphi 0, %s49
    %s67 = sphi 0, %s67
    %s69 = sphi 0, %s67
    %s70 = sphi 0, %s69
    %s84 = sphi 0, %s70
    %s88 = sphi 0, %s88
    %s90 = sphi 0, %s88
    %s91 = sphi 0, %s90
    %s105 = sphi 0, %s91
    %s109 = sphi 0, %s109
    %s111 = sphi 0, %s109
    %s112 = sphi 0, %s111
    %s126 = sphi 0, %s112
    %s132 = sphi 0, %s134
    %s135 = sphi 0, %s132
    %s136 = sphi 0, %s135
    %s152 = sphi 0, %s136
  $region4: #{base_pred_model_forward.1} parent=0 // loop_header_branch
    %15 = sbr.rel (%p13) target = $region8
  $region5: #{base_pred_model_forward.1} parent=0 // loop_body
    %s17 = ssub.s32 %s12, 1
    %s18 = ssub.s32 %s12, 2
    %s19 = sadd.s32 %s12, 1
    %s20 = ssub.s32 %s12, %s19
    %p21 = scmp.eq.s32.totalorder %s20, 0
    %s23 = sadd.s32 %s22, 1
    %s24 = scalar_select %p21, %s22, %s23
    %p27 = pneg %p21
    %p28 = scmp.eq.s32.totalorder %s12, 1
    %p29 = por %p27, %p28
    %p30 = scmp.ne.s32.totalorder %s22, %s25
    %p31 = scmp.eq.s32.totalorder %s12, 0
    %p32 = por %p30, %p31
    %p33 = scmp.ne.s32.totalorder %s22, %s25
    %p34 = scmp.eq.s32.totalorder %s17, 1
    %p35 = por %p33, %p34
    %p36 = scmp.ne.s32.totalorder %s25, %s26
    %p37 = scmp.eq.s32.totalorder %s17, 0
    %p38 = por %p36, %p37
    %p39 = scmp.ne.s32.totalorder %s25, %s26
    %p40 = scmp.eq.s32.totalorder %s18, 1
    %p41 = por %p39, %p40
    %p43 = scmp.ne.s32.totalorder %s26, %s42
    %p44 = scmp.eq.s32.totalorder %s18, 0
    %p45 = por %p43, %p44
    %s47 = sadd.s32 %s46, 1
    %p50 = scmp.eq.s32.totalorder %s12, 1
    %p51 = scmp.ne.s32.totalorder %s46, %s48
    %p52 = scmp.eq.s32.totalorder %s12, 0
    %p53 = por %p51, %p52
    %p54 = scmp.ne.s32.totalorder %s46, %s48
    %p55 = scmp.eq.s32.totalorder %s17, 1
    %p56 = por %p54, %p55
    %p57 = scmp.ne.s32.totalorder %s48, %s49
    %p58 = scmp.eq.s32.totalorder %s17, 0
    %p59 = por %p57, %p58
    %p60 = scmp.ne.s32.totalorder %s48, %s49
    %p61 = scmp.eq.s32.totalorder %s18, 1
    %p62 = por %p60, %p61
    %p64 = scmp.ne.s32.totalorder %s49, %s63
    %p65 = scmp.eq.s32.totalorder %s18, 0
    %p66 = por %p64, %p65
    %s68 = sadd.s32 %s67, 1
    %p71 = scmp.eq.s32.totalorder %s12, 1
    %p72 = scmp.ne.s32.totalorder %s67, %s69
    %p73 = scmp.eq.s32.totalorder %s12, 0
    %p74 = por %p72, %p73
    %p75 = scmp.ne.s32.totalorder %s67, %s69
    %p76 = scmp.eq.s32.totalorder %s17, 1
    %p77 = por %p75, %p76
    %p78 = scmp.ne.s32.totalorder %s69, %s70
    %p79 = scmp.eq.s32.totalorder %s17, 0
    %p80 = por %p78, %p79
    %p81 = scmp.ne.s32.totalorder %s69, %s70
    %p82 = scmp.eq.s32.totalorder %s18, 1
    %p83 = por %p81, %p82
    %p85 = scmp.ne.s32.totalorder %s70, %s84
    %p86 = scmp.eq.s32.totalorder %s18, 0
    %p87 = por %p85, %p86
    %s89 = sadd.s32 %s88, 1
    %p92 = scmp.eq.s32.totalorder %s12, 1
    %p93 = scmp.ne.s32.totalorder %s88, %s90
    %p94 = scmp.eq.s32.totalorder %s12, 0
    %p95 = por %p93, %p94
    %p96 = scmp.ne.s32.totalorder %s88, %s90
    %p97 = scmp.eq.s32.totalorder %s17, 1
    %p98 = por %p96, %p97
    %p99 = scmp.ne.s32.totalorder %s90, %s91
    %p100 = scmp.eq.s32.totalorder %s17, 0
    %p101 = por %p99, %p100
    %p102 = scmp.ne.s32.totalorder %s90, %s91
    %p103 = scmp.eq.s32.totalorder %s18, 1
    %p104 = por %p102, %p103
    %p106 = scmp.ne.s32.totalorder %s91, %s105
    %p107 = scmp.eq.s32.totalorder %s18, 0
    %p108 = por %p106, %p107
    %s110 = sadd.s32 %s109, 1
    %p113 = scmp.eq.s32.totalorder %s12, 1
    %p114 = scmp.ne.s32.totalorder %s109, %s111
    %p115 = scmp.eq.s32.totalorder %s12, 0
    %p116 = por %p114, %p115
    %p117 = scmp.ne.s32.totalorder %s109, %s111
    %p118 = scmp.eq.s32.totalorder %s17, 1
    %p119 = por %p117, %p118
    %p120 = scmp.ne.s32.totalorder %s111, %s112
    %p121 = scmp.eq.s32.totalorder %s17, 0
    %p122 = por %p120, %p121
    %p123 = scmp.ne.s32.totalorder %s111, %s112
    %p124 = scmp.eq.s32.totalorder %s18, 1
    %p125 = por %p123, %p124
    %p127 = scmp.ne.s32.totalorder %s112, %s126
    %p128 = scmp.eq.s32.totalorder %s18, 0
    %p129 = por %p127, %p128
    %s130 = ssub.s32 %s12, %s19
    %p131 = scmp.eq.s32.totalorder %s130, 0
    %s133 = sadd.s32 %s132, 1
    %s134 = scalar_select %p131, %s132, %s133
    %p137 = pneg %p131
    %p138 = scmp.eq.s32.totalorder %s12, 1
    %p139 = por %p137, %p138
    %p140 = scmp.ne.s32.totalorder %s132, %s135
    %p141 = scmp.eq.s32.totalorder %s12, 0
    %p142 = por %p140, %p141
    %p143 = scmp.ne.s32.totalorder %s132, %s135
    %p144 = scmp.eq.s32.totalorder %s17, 1
    %p145 = por %p143, %p144
    %p146 = scmp.ne.s32.totalorder %s135, %s136
    %p147 = scmp.eq.s32.totalorder %s17, 0
    %p148 = por %p146, %p147
    %p149 = scmp.ne.s32.totalorder %s135, %s136
    %p150 = scmp.eq.s32.totalorder %s18, 1
    %p151 = por %p149, %p150
    %p153 = scmp.ne.s32.totalorder %s136, %s152
    %p154 = scmp.eq.s32.totalorder %s18, 0
    %p155 = por %p153, %p154
    %p156 = scmp.le.s32.totalorder 1, %s12
    %p157 = scmp.lt.s32.totalorder %s12, 3
    %p158 = pnand %p156, %p157
    %p159 = pneg %p158
    // Predicated region
    $region9: #{base_pred_model_forward.1} parent=5 // pred_check
      _
    $region10: #{base_pred_model_forward.1} parent=5 // pred_check_branch
      %161 = sbr.rel (%p158) target = $region12
    $region11: #{base_pred_model_forward.1} parent=5 // pred_region
      %s162 = ssub.s32 %s12, 1
      // Predicated region
      $region13: #{base_pred_model_forward.1} parent=11 // pred_check
        %p163 = pneg %p59
      $region14: #{base_pred_model_forward.1} parent=11 // pred_check_branch
        %165 = sbr.rel (%p163) target = $region16
      $region15: #{base_pred_model_forward.1} parent=11 // pred_region
        _
      $region16: #{base_pred_model_forward.1} parent=11 // pred_fallthru
        _
      // Predicated region
      $region17: #{base_pred_model_forward.1} parent=11 // pred_check
        %p166 = pneg %p80
      $region18: #{base_pred_model_forward.1} parent=11 // pred_check_branch
        %168 = sbr.rel (%p166) target = $region20
      $region19: #{base_pred_model_forward.1} parent=11 // pred_region
        _
      $region20: #{base_pred_model_forward.1} parent=11 // pred_fallthru
        _
      // Predicated region
      $region21: #{base_pred_model_forward.1} parent=11 // pred_check
        %p169 = pneg %p101
      $region22: #{base_pred_model_forward.1} parent=11 // pred_check_branch
        %171 = sbr.rel (%p169) target = $region24
      $region23: #{base_pred_model_forward.1} parent=11 // pred_region
        _
      $region24: #{base_pred_model_forward.1} parent=11 // pred_fallthru
        _
      // Predicated region
      $region25: #{base_pred_model_forward.1} parent=11 // pred_check
        %p172 = pneg %p122
      $region26: #{base_pred_model_forward.1} parent=11 // pred_check_branch
        %174 = sbr.rel (%p172) target = $region28
      $region27: #{base_pred_model_forward.1} parent=11 // pred_region
        _
      $region28: #{base_pred_model_forward.1} parent=11 // pred_fallthru
        _
    $region12: #{base_pred_model_forward.1} parent=5 // pred_fallthru
      _
    %p175 = scmp.lt.s32.totalorder %s12, 2
    // Predicated region
    $region29: #{base_pred_model_forward.1} parent=5 // pred_check
      %p176 = pneg %p175
    $region30: #{base_pred_model_forward.1} parent=5 // pred_check_branch
      %178 = sbr.rel (%p176) target = $region32
    $region31: #{base_pred_model_forward.1} parent=5 // pred_region
      // Predicated region
      $region33: #{base_pred_model_forward.1} parent=31 // pred_check
        %p179 = pneg %p32
      $region34: #{base_pred_model_forward.1} parent=31 // pred_check_branch
        %181 = sbr.rel (%p179) target = $region36
      $region35: #{base_pred_model_forward.1} parent=31 // pred_region
        %s182 = smul.u32 16, %s12
        %p183 = scmp.lt.s32.totalorder %s182, 31
        %s184 = scalar_select %p183, %s182, 31
        %s185 = smul.addr %s184, 8
        %s186 = scalar_lea.vmem %s0, %s185
        %s187 = smul.u32 16, %s12
      $region36: #{base_pred_model_forward.1} parent=31 // pred_fallthru
        _
    $region32: #{base_pred_model_forward.1} parent=5 // pred_fallthru
      _
    %p188 = scmp.le.s32.totalorder 1, %s12
    %p189 = scmp.lt.s32.totalorder %s12, 3
    %p190 = pnand %p188, %p189
    %p191 = pneg %p190
    // Predicated region
    $region37: #{base_pred_model_forward.1} parent=5 // pred_check
      _
    $region38: #{base_pred_model_forward.1} parent=5 // pred_check_branch
      %193 = sbr.rel (%p190) target = $region40
    $region39: #{base_pred_model_forward.1} parent=5 // pred_region
      %s194 = ssub.s32 %s12, 1
      %s195 = smul.u32 16, %s17
      %p196 = scmp.lt.s32.totalorder %s195, 31
      %s197 = scalar_select %p196, %s195, 31
      %s198 = smul.addr %s197, 8
      %s199 = scalar_lea.vmem %s0, %s198
      %p200 = pneg %p38
      %p201 = pneg %p35
      %p202 = pneg %p59
      %p203 = pneg %p56
      %p204 = pneg %p80
      %p205 = pneg %p77
      %p206 = pneg %p101
      %p207 = pneg %p98
      %p208 = pneg %p122
      %p209 = pneg %p119
      %p210 = pneg %p148
      %p211 = pneg %p145
      %s212 = smul.u32 16, %s17
      %p213 = scmp.lt.s32.totalorder %s212, 31
      %s214 = scalar_select %p213, %s212, 31
      %s215 = smul.addr %s214, 8
      %s216 = scalar_lea.vmem %s5, %s215
      %s217 = smul.u32 16, %s17
      %p218 = scmp.lt.s32.totalorder %s217, 31
      %s219 = scalar_select %p218, %s217, 31
      %s220 = smul.addr %s219, 8
      %s221 = scalar_lea.vmem %s0, %s220
      %s222 = smul.u32 16, %s17
      %s223 = smul.u32 16, %s17
      %p224 = scmp.lt.s32.totalorder %s223, 31
      %s225 = scalar_select %p224, %s223, 31
      %s226 = smul.addr %s225, 8
      %s227 = scalar_lea.vmem %s5, %s226
      %s228 = smul.u32 16, %s17
      %v230 = vld [vmem:[%s221] sm:$0xff]
      %v231 = vld [vmem:[%s221 + $0x8] sm:$0xff]
      %v232 = vld [vmem:[%s221 + $0x10] sm:$0xff]
      %v233 = vld [vmem:[%s221 + $0x18] sm:$0xff]
      %v234 = vld [vmem:[%s221 + $0x20] sm:$0xff]
      %v235 = vld [vmem:[%s221 + $0x28] sm:$0xff]
      %v236 = vld [vmem:[%s221 + $0x30] sm:$0xff]
      %v237 = vld [vmem:[%s221 + $0x38] sm:$0xff]
      %v238 = vld [vmem:[%s221 + $0x40] sm:$0xff]
      %v239 = vld [vmem:[%s221 + $0x48] sm:$0xff]
      %v240 = vld [vmem:[%s221 + $0x50] sm:$0xff]
      %v241 = vld [vmem:[%s221 + $0x58] sm:$0xff]
      %v242 = vld [vmem:[%s221 + $0x60] sm:$0xff]
      %v243 = vld [vmem:[%s221 + $0x68] sm:$0xff]
      %v244 = vld [vmem:[%s221 + $0x70] sm:$0xff]
      %v245 = vld [vmem:[%s221 + $0x78] sm:$0xff]
      %v246 = vpack.c.bf16 %v231, %v230
      %v247 = vpack.c.bf16 %v233, %v232
      %v248 = vpack.c.bf16 %v235, %v234
      %v249 = vpack.c.bf16 %v237, %v236
      %v250 = vpack.c.bf16 %v239, %v238
      %v251 = vpack.c.bf16 %v241, %v240
      %v252 = vpack.c.bf16 %v243, %v242
      %v253 = vpack.c.bf16 %v245, %v244
      %v254 = vld [vmem:[%s1] sm:$0xf]
      %v255 = vld [vmem:[%s1 + $0x4] sm:$0xf]
      %v256 = vld [vmem:[%s1 + $0x8] sm:$0xf]
      %v257 = vld [vmem:[%s1 + $0xc] sm:$0xf]
      %v258 = vld [vmem:[%s2] sm:$0x1]
      %v260 = vlaneseq
      %v261 = vshrl.u32 %v260, 7
      %v262 = vsub.s32 0, %v261
      %v263 = vrot.slane %v258, %v262
      %v269 = vunpack.c.l.b16 %v254
      %v270 = vunpack.c.l.b16 %v255
      %v271 = vunpack.c.l.b16 %v256
      %v272 = vunpack.c.l.b16 %v257
      %v273 = vpack.c.b16 %v270, %v269
      %v274 = vpack.c.b16 %v272, %v271
      %vm277 = vcmask 261120
      %v279 = vsel %vm277, %v246, 0
      %v282 = vsel %vm277, %v247, 0
      %v285 = vsel %vm277, %v248, 0
      %v288 = vsel %vm277, %v249, 0
      %v291 = vsel %vm277, %v250, 0
      %v294 = vsel %vm277, %v251, 0
      %v297 = vsel %vm277, %v252, 0
      %v300 = vsel %vm277, %v253, 0
      %302 = vmatprep.subr.bf16.mxu0 0
      %303 = vmatpush1.bf16.msra.mxu0 0
      %304 = vmatprep.subr.bf16.mxu0 0
      %305 = vmatpush1.bf16.msra.mxu0 0
      %306 = vmatprep.subr.bf16.mxu0 0
      %307 = vmatpush1.bf16.msra.mxu0 0
      %308 = vmatprep.subr.bf16.mxu0 0
      %309 = vmatpush1.bf16.msra.mxu0 0
      %310 = vmatprep.subr.bf16.mxu0 0
      %311 = vmatpush1.bf16.msra.mxu0 0
      %312 = vmatprep.subr.bf16.mxu0 0
      %313 = vmatpush1.bf16.msra.mxu0 0
      %314 = vmatprep.subr.bf16.mxu0 0
      %315 = vmatpush1.bf16.msra.mxu0 %v274
      %316 = vmatprep.subr.bf16.mxu0 0
      %317 = vmatpush1.bf16.msra.mxu0 %v273
      %318 = vmatprep.subr.bf16.mxu0 0
      %319 = vmatpush2.bf16.msra.mxu0 0
      %320 = vmatprep.subr.bf16.mxu0 0
      %321 = vmatpush2.bf16.msra.mxu0 0
      %322 = vmatprep.subr.bf16.mxu0 0
      %323 = vmatpush2.bf16.msra.mxu0 0
      %324 = vmatprep.subr.bf16.mxu0 0
      %325 = vmatpush2.bf16.msra.mxu0 0
      %326 = vmatprep.subr.bf16.mxu0 0
      %327 = vmatpush2.bf16.msra.mxu0 0
      %328 = vmatprep.subr.bf16.mxu0 0
      %329 = vmatpush2.bf16.msra.mxu0 0
      %330 = vmatprep.subr.bf16.mxu0 0
      %331 = vmatpush2.bf16.msra.mxu0 0
      %332 = vmatprep.subr.bf16.mxu0 0
      %333 = vmatpush2.bf16.msra.mxu0 0
      %334 = vmatprep.mubr.bf16.mxu0 0
      %335 = vmatmul.mubr.bf16.gmra.mxu0 %v279
      %v336 = vpop.f32.mrf.mxu0
      %v337 = vadd.f32 %v263, %v336
      %v338 = vpop.f32.mrf.mxu0
      %v339 = vpop.f32.mrf.mxu0
      %v340 = vadd.f32 %v263, %v339
      %v341 = vpop.f32.mrf.mxu0
      %342 = vmatprep.mubr.bf16.mxu0 0
      %343 = vmatmul.mubr.bf16.gmra.mxu0 %v282
      %v344 = vpop.f32.mrf.mxu0
      %v345 = vadd.f32 %v263, %v344
      %v346 = vpop.f32.mrf.mxu0
      %v347 = vpop.f32.mrf.mxu0
      %v348 = vadd.f32 %v263, %v347
      %v349 = vpop.f32.mrf.mxu0
      %350 = vmatprep.mubr.bf16.mxu0 0
      %351 = vmatmul.mubr.bf16.gmra.mxu0 %v285
      %v352 = vpop.f32.mrf.mxu0
      %v353 = vadd.f32 %v263, %v352
      %v354 = vpop.f32.mrf.mxu0
      %v355 = vpop.f32.mrf.mxu0
      %v356 = vadd.f32 %v263, %v355
      %v357 = vpop.f32.mrf.mxu0
      %358 = vmatprep.mubr.bf16.mxu0 0
      %359 = vmatmul.mubr.bf16.gmra.mxu0 %v288
      %v360 = vpop.f32.mrf.mxu0
      %v361 = vadd.f32 %v263, %v360
      %v362 = vpop.f32.mrf.mxu0
      %v363 = vpop.f32.mrf.mxu0
      %v364 = vadd.f32 %v263, %v363
      %v365 = vpop.f32.mrf.mxu0
      %366 = vmatprep.mubr.bf16.mxu0 0
      %367 = vmatmul.mubr.bf16.gmra.mxu0 %v291
      %v368 = vpop.f32.mrf.mxu0
      %v369 = vadd.f32 %v263, %v368
      %v370 = vpop.f32.mrf.mxu0
      %v371 = vpop.f32.mrf.mxu0
      %v372 = vadd.f32 %v263, %v371
      %v373 = vpop.f32.mrf.mxu0
      %374 = vmatprep.mubr.bf16.mxu0 0
      %375 = vmatmul.mubr.bf16.gmra.mxu0 %v294
      %v376 = vpop.f32.mrf.mxu0
      %v377 = vadd.f32 %v263, %v376
      %v378 = vpop.f32.mrf.mxu0
      %v379 = vpop.f32.mrf.mxu0
      %v380 = vadd.f32 %v263, %v379
      %v381 = vpop.f32.mrf.mxu0
      %382 = vmatprep.mubr.bf16.mxu0 0
      %383 = vmatmul.mubr.bf16.gmra.mxu0 %v297
      %v384 = vpop.f32.mrf.mxu0
      %v385 = vadd.f32 %v263, %v384
      %v386 = vpop.f32.mrf.mxu0
      %v387 = vpop.f32.mrf.mxu0
      %v388 = vadd.f32 %v263, %v387
      %v389 = vpop.f32.mrf.mxu0
      %390 = vmatprep.mubr.bf16.mxu0 0
      %391 = vmatmul.mubr.bf16.gmra.mxu0 %v300
      %v392 = vpop.f32.mrf.mxu0
      %v393 = vadd.f32 %v263, %v392
      %v394 = vpop.f32.mrf.mxu0
      %v395 = vpop.f32.mrf.mxu0
      %v396 = vadd.f32 %v263, %v395
      %v397 = vpop.f32.mrf.mxu0
      %398 = vdwg.mxu0
      %v399 = vmax.f32 %v337, 0.0
      %v400 = vmax.f32 %v340, 0.0
      %v401 = vmax.f32 %v345, 0.0
      %v402 = vmax.f32 %v348, 0.0
      %v403 = vmax.f32 %v353, 0.0
      %v404 = vmax.f32 %v356, 0.0
      %v405 = vmax.f32 %v361, 0.0
      %v406 = vmax.f32 %v364, 0.0
      %v407 = vmax.f32 %v369, 0.0
      %v408 = vmax.f32 %v372, 0.0
      %v409 = vmax.f32 %v377, 0.0
      %v410 = vmax.f32 %v380, 0.0
      %v411 = vmax.f32 %v385, 0.0
      %v412 = vmax.f32 %v388, 0.0
      %v413 = vmax.f32 %v393, 0.0
      %v414 = vmax.f32 %v396, 0.0
      %v415 = vld [vmem:[%s3] sm:$0x1]
      %v417 = vlaneseq
      %v418 = vshrl.u32 %v417, 7
      %v419 = vsub.s32 0, %v418
      %v420 = vrot.slane %v415, %v419
      %v422 = vmul.f32 %v399, %v420
      %v423 = vmul.f32 %v400, %v420
      %v424 = vmul.f32 %v401, %v420
      %v425 = vmul.f32 %v402, %v420
      %v426 = vmul.f32 %v403, %v420
      %v427 = vmul.f32 %v404, %v420
      %v428 = vmul.f32 %v405, %v420
      %v429 = vmul.f32 %v406, %v420
      %v430 = vmul.f32 %v407, %v420
      %v431 = vmul.f32 %v408, %v420
      %v432 = vmul.f32 %v409, %v420
      %v433 = vmul.f32 %v410, %v420
      %v434 = vmul.f32 %v411, %v420
      %v435 = vmul.f32 %v412, %v420
      %v436 = vmul.f32 %v413, %v420
      %v437 = vmul.f32 %v414, %v420
      %438 = vadd.xlane.f32.xlu0 %v422
      %v439 = vpop.xlane.xlu0 %438
      %440 = vadd.xlane.f32.xlu0 %v423
      %v441 = vpop.xlane.xlu0 %440
      %442 = vadd.xlane.f32.xlu0 %v424
      %v443 = vpop.xlane.xlu0 %442
      %444 = vadd.xlane.f32.xlu0 %v425
      %v445 = vpop.xlane.xlu0 %444
      %446 = vadd.xlane.f32.xlu0 %v426
      %v447 = vpop.xlane.xlu0 %446
      %448 = vadd.xlane.f32.xlu0 %v427
      %v449 = vpop.xlane.xlu0 %448
      %450 = vadd.xlane.f32.xlu0 %v428
      %v451 = vpop.xlane.xlu0 %450
      %452 = vadd.xlane.f32.xlu0 %v429
      %v453 = vpop.xlane.xlu0 %452
      %454 = vadd.xlane.f32.xlu0 %v430
      %v455 = vpop.xlane.xlu0 %454
      %456 = vadd.xlane.f32.xlu0 %v431
      %v457 = vpop.xlane.xlu0 %456
      %458 = vadd.xlane.f32.xlu0 %v432
      %v459 = vpop.xlane.xlu0 %458
      %460 = vadd.xlane.f32.xlu0 %v433
      %v461 = vpop.xlane.xlu0 %460
      %462 = vadd.xlane.f32.xlu0 %v434
      %v463 = vpop.xlane.xlu0 %462
      %464 = vadd.xlane.f32.xlu0 %v435
      %v465 = vpop.xlane.xlu0 %464
      %466 = vadd.xlane.f32.xlu0 %v436
      %v467 = vpop.xlane.xlu0 %466
      %468 = vadd.xlane.f32.xlu0 %v437
      %v469 = vpop.xlane.xlu0 %468
      %s470 = sld [smem:[#allocation2]]
      %v471 = vstv %s470
      %v472 = vadd.f32 %v439, %v471
      %v473 = vadd.f32 %v441, %v471
      %v474 = vadd.f32 %v443, %v471
      %v475 = vadd.f32 %v445, %v471
      %v476 = vadd.f32 %v447, %v471
      %v477 = vadd.f32 %v449, %v471
      %v478 = vadd.f32 %v451, %v471
      %v479 = vadd.f32 %v453, %v471
      %v480 = vadd.f32 %v455, %v471
      %v481 = vadd.f32 %v457, %v471
      %v482 = vadd.f32 %v459, %v471
      %v483 = vadd.f32 %v461, %v471
      %v484 = vadd.f32 %v463, %v471
      %v485 = vadd.f32 %v465, %v471
      %v486 = vadd.f32 %v467, %v471
      %v487 = vadd.f32 %v469, %v471
      %vm488 = vcmask 7168
      %489 = vst.msk [vmem:[%s227] sm:$0xff] %vm488, %v472
      %490 = vst.msk [vmem:[%s227 + $0x8] sm:$0xff] %vm488, %v473
      %491 = vst.msk [vmem:[%s227 + $0x10] sm:$0xff] %vm488, %v474
      %492 = vst.msk [vmem:[%s227 + $0x18] sm:$0xff] %vm488, %v475
      %493 = vst.msk [vmem:[%s227 + $0x20] sm:$0xff] %vm488, %v476
      %494 = vst.msk [vmem:[%s227 + $0x28] sm:$0xff] %vm488, %v477
      %495 = vst.msk [vmem:[%s227 + $0x30] sm:$0xff] %vm488, %v478
      %496 = vst.msk [vmem:[%s227 + $0x38] sm:$0xff] %vm488, %v479
      %497 = vst.msk [vmem:[%s227 + $0x40] sm:$0xff] %vm488, %v480
      %498 = vst.msk [vmem:[%s227 + $0x48] sm:$0xff] %vm488, %v481
      %499 = vst.msk [vmem:[%s227 + $0x50] sm:$0xff] %vm488, %v482
      %500 = vst.msk [vmem:[%s227 + $0x58] sm:$0xff] %vm488, %v483
      %501 = vst.msk [vmem:[%s227 + $0x60] sm:$0xff] %vm488, %v484
      %502 = vst.msk [vmem:[%s227 + $0x68] sm:$0xff] %vm488, %v485
      %503 = vst.msk [vmem:[%s227 + $0x70] sm:$0xff] %vm488, %v486
      %504 = vst.msk [vmem:[%s227 + $0x78] sm:$0xff] %vm488, %v487
      %s505 = smul.u32 16, %s17
      %p506 = scmp.lt.s32.totalorder %s505, 31
      %s507 = scalar_select %p506, %s505, 31
      %s508 = smul.addr %s507, 8
      %s509 = scalar_lea.vmem %s5, %s508
      // Predicated region
      $region41: #{base_pred_model_forward.1} parent=39 // pred_check
        %p510 = pneg %p145
      $region42: #{base_pred_model_forward.1} parent=39 // pred_check_branch
        %512 = sbr.rel (%p510) target = $region44
      $region43: #{base_pred_model_forward.1} parent=39 // pred_region
        %s513 = smul.u32 16, %s17
      $region44: #{base_pred_model_forward.1} parent=39 // pred_fallthru
        _
    $region40: #{base_pred_model_forward.1} parent=5 // pred_fallthru
      _
    %p514 = scmp.le.s32.totalorder 2, %s12
    // Predicated region
    $region45: #{base_pred_model_forward.1} parent=5 // pred_check
      %p515 = pneg %p514
    $region46: #{base_pred_model_forward.1} parent=5 // pred_check_branch
      %517 = sbr.rel (%p515) target = $region48
    $region47: #{base_pred_model_forward.1} parent=5 // pred_region
      %s518 = ssub.s32 %s12, 2
      // Predicated region
      $region49: #{base_pred_model_forward.1} parent=47 // pred_check
        %p519 = pneg %p151
      $region50: #{base_pred_model_forward.1} parent=47 // pred_check_branch
        %521 = sbr.rel (%p519) target = $region52
      $region51: #{base_pred_model_forward.1} parent=47 // pred_region
        %s522 = smul.u32 16, %s18
        %p523 = scmp.lt.s32.totalorder %s522, 31
        %s524 = scalar_select %p523, %s522, 31
        %s525 = smul.addr %s524, 8
        %s526 = scalar_lea.vmem %s5, %s525
      $region52: #{base_pred_model_forward.1} parent=47 // pred_fallthru
        _
    $region48: #{base_pred_model_forward.1} parent=5 // pred_fallthru
      _
  $region6: #{base_pred_model_forward.1} parent=0 // loop_footer
    %s16 = sadd.s32 1, %s12
  $region7: #{base_pred_model_forward.1} parent=0 // loop_footer_branch
    %11 = sbr.rel target = $region3
  $region8: #{base_pred_model_forward.1} parent=0 // loop_exit
    _

</llo_original>
